<compile_context>
chip_gen: v5e
topology: v5e:2x2
jax: 0.10.0
libtpu: 0.0.40
codegen_flags: <defaults>
</compile_context>

<pallas_src>
import functools

import jax
import jax.numpy as jnp
from jax.experimental import pallas as pl
from jax.experimental.pallas import tpu as pltpu


def addnorm_kernel(x_ref, a_ref, b_ref, w_ref, wb_ref, *rest, dropout_p, eps):
    # rest is (u_ref, o_ref) when dropout is active, else (o_ref,).
    if dropout_p > 0.0:
        u_ref, o_ref = rest
    else:
        (o_ref,) = rest

    x = x_ref[...].astype(jnp.float32)                       # (tile, D)
    d = x.shape[-1]

    # ---- layer-norm style stats over the last dim (unbiased std, like torch.std) ----
    mean = jnp.mean(x, axis=-1, keepdims=True)
    diff = x - mean
    var = jnp.sum(diff * diff, axis=-1, keepdims=True) * (1.0 / (d - 1))
    std = jnp.sqrt(var)
    inv = 1.0 / (std + eps)                                  # narrow (tile, 1) divide
    normed = a_ref[...] * (diff * inv) + b_ref[...]          # (tile, D), f32

    # ---- sublayer: Linear(D, D), fused on the MXU (bf16 in, f32 accumulate) ----
    # TODO(synk): arbitrary user-supplied `sublayer` callables cannot be fused
    # generically; a Linear sublayer is instantiated here.
    y = jnp.dot(normed.astype(w_ref.dtype), w_ref[...],
                preferred_element_type=jnp.float32)
    y = y + wb_ref[...].astype(jnp.float32)

    # ---- inverted dropout (mask streamed in; statically skipped when p == 0) ----
    if dropout_p > 0.0:
        keep = u_ref[...] >= jnp.float32(dropout_p)
        y = jnp.where(keep, y * (1.0 / (1.0 - dropout_p)), 0.0)

    # ---- residual add ----
    o_ref[...] = (x + y).astype(o_ref.dtype)


def add_norm(x, a2, b2, w, wb, *, dropout_key=None, dropout_p=0.0, eps=1e-6,
             tile_rows=256):
    """x: [B, S, D]; a2, b2, wb: [D]; w: [D, D] (sublayer Linear weight)."""
    assert 0.0 <= dropout_p < 1.0, "dropout_p must be in [0, 1)"
    B, S, D = x.shape
    rows = B * S

    tile_rows = min(tile_rows, rows)
    assert rows % tile_rows == 0, "rows must be divisible by tile_rows"
    assert tile_rows % 8 == 0, "tile_rows must be a multiple of 8 (sublane)"
    n_tiles = rows // tile_rows

    xf = x.reshape(rows, D)
    w_bf16 = w.astype(jnp.bfloat16)          # halves W HBM traffic, bf16-native MXU

    kernel = functools.partial(addnorm_kernel, dropout_p=dropout_p, eps=eps)

    row_spec = pl.BlockSpec((tile_rows, D), lambda i: (i, 0))
    vec_spec = pl.BlockSpec((1, D), lambda i: (0, 0))

    in_specs = [
        row_spec,                                       # x rows
        vec_spec,                                       # a_2
        vec_spec,                                       # b_2
        pl.BlockSpec((D, D), lambda i: (0, 0)),         # sublayer W (bf16)
        vec_spec,                                       # sublayer bias
    ]
    inputs = [xf, a2.reshape(1, D), b2.reshape(1, D), w_bf16, wb.reshape(1, D)]

    if dropout_p > 0.0:
        assert dropout_key is not None, "dropout_key required when dropout_p > 0"
        u = jax.random.uniform(dropout_key, (rows, D), dtype=jnp.float32)
        in_specs.append(row_spec)                       # dropout uniforms
        inputs.append(u)

    out = pl.pallas_call(
        kernel,
        out_shape=jax.ShapeDtypeStruct((rows, D), x.dtype),
        grid=(n_tiles,),
        in_specs=in_specs,
        out_specs=row_spec,
        compiler_params=pltpu.CompilerParams(
            dimension_semantics=("parallel",)),          # row tiles are independent
    )(*inputs)
    return out.reshape(B, S, D)


if __name__ == "__main__":
    B, S, D = 2, 8, 32          # size == D == 32
    dropout_p = 0.1
    eps = 1e-6

    key = jax.random.PRNGKey(0)
    kx, kw, kd = jax.random.split(key, 3)

    x = jax.random.normal(kx, (B, S, D), dtype=jnp.float32)

    # Module parameters (deterministic init, same as nn.Parameter ones/zeros).
    a2 = jnp.ones((D,), dtype=jnp.float32)
    b2 = jnp.zeros((D,), dtype=jnp.float32)

    # Deterministic sublayer weights (Linear(D, D)).
    w = jax.random.normal(kw, (D, D), dtype=jnp.float32) * (1.0 / jnp.sqrt(D))
    wb = jnp.zeros((D,), dtype=jnp.float32)

    out = add_norm(x, a2, b2, w, wb, dropout_key=kd, dropout_p=dropout_p, eps=eps)
    jax.block_until_ready(out)
    assert out.shape == (B, S, D)
    print("KERNEL_OK")
</pallas_src>

<mosaic_0001>
module attributes {stable_mosaic.version = 11 : i64} {
  func.func @addnorm_kernel(%arg0: i32, %arg1: memref<16x32xf32, #tpu.memory_space<vmem>>, %arg2: memref<1x32xf32, #tpu.memory_space<vmem>>, %arg3: memref<1x32xf32, #tpu.memory_space<vmem>>, %arg4: memref<32x32xbf16, #tpu.memory_space<vmem>>, %arg5: memref<1x32xf32, #tpu.memory_space<vmem>>, %arg6: memref<16x32xf32, #tpu.memory_space<vmem>>, %arg7: memref<16x32xf32, #tpu.memory_space<vmem>>) attributes {dimension_semantics = [#tpu.dimension_semantics<parallel>], iteration_bounds = array<i64: 1>, scalar_prefetch = 0 : i64, scratch_operands = 0 : i64, tpu.core_type = #tpu.core_type<tc>, window_params = [{transform_indices = @transform_0, window_bounds = array<i64: 16, 32>}, {pipeline_mode = #tpu.pipeline_mode<synchronous>, transform_indices = @transform_1, window_bounds = array<i64: 1, 32>}, {pipeline_mode = #tpu.pipeline_mode<synchronous>, transform_indices = @transform_2, window_bounds = array<i64: 1, 32>}, {pipeline_mode = #tpu.pipeline_mode<synchronous>, transform_indices = @transform_3, window_bounds = array<i64: 32, 32>}, {pipeline_mode = #tpu.pipeline_mode<synchronous>, transform_indices = @transform_4, window_bounds = array<i64: 1, 32>}, {transform_indices = @transform_5, window_bounds = array<i64: 16, 32>}, {transform_indices = @transform_6, window_bounds = array<i64: 16, 32>}]} {
    %c0 = arith.constant 0 : index
    %c0_0 = arith.constant 0 : index
    %0 = vector.load %arg1[%c0, %c0_0] : memref<16x32xf32, #tpu.memory_space<vmem>>, vector<16x32xf32>
    %cst = arith.constant dense<0.000000e+00> : vector<16xf32>
    %1 = vector.multi_reduction <add>, %0, %cst [1] : vector<16x32xf32> to vector<16xf32>
    %2 = vector.shape_cast %1 : vector<16xf32> to vector<16x1xf32>
    %cst_1 = arith.constant 3.200000e+01 : f32
    %3 = vector.broadcast %cst_1 : f32 to vector<16x1xf32>
    %4 = arith.divf %2, %3 : vector<16x1xf32>
    %5 = vector.broadcast %4 : vector<16x1xf32> to vector<16x32xf32>
    %6 = arith.subf %0, %5 : vector<16x32xf32>
    %7 = arith.mulf %6, %6 : vector<16x32xf32>
    %cst_2 = arith.constant dense<0.000000e+00> : vector<16xf32>
    %8 = vector.multi_reduction <add>, %7, %cst_2 [1] : vector<16x32xf32> to vector<16xf32>
    %9 = vector.shape_cast %8 : vector<16xf32> to vector<16x1xf32>
    %cst_3 = arith.constant 0.0322580636 : f32
    %10 = vector.broadcast %cst_3 : f32 to vector<16x1xf32>
    %11 = arith.mulf %9, %10 : vector<16x1xf32>
    %12 = math.sqrt %11 : vector<16x1xf32>
    %cst_4 = arith.constant 9.99999997E-7 : f32
    %13 = vector.broadcast %cst_4 : f32 to vector<16x1xf32>
    %14 = arith.addf %12, %13 : vector<16x1xf32>
    %cst_5 = arith.constant 1.000000e+00 : f32
    %15 = vector.broadcast %cst_5 : f32 to vector<16x1xf32>
    %16 = arith.divf %15, %14 : vector<16x1xf32>
    %c0_6 = arith.constant 0 : index
    %c0_7 = arith.constant 0 : index
    %17 = vector.load %arg2[%c0_6, %c0_7] : memref<1x32xf32, #tpu.memory_space<vmem>>, vector<1x32xf32>
    %18 = vector.broadcast %16 : vector<16x1xf32> to vector<16x32xf32>
    %19 = arith.mulf %6, %18 : vector<16x32xf32>
    %20 = vector.broadcast %17 : vector<1x32xf32> to vector<16x32xf32>
    %21 = arith.mulf %20, %19 : vector<16x32xf32>
    %c0_8 = arith.constant 0 : index
    %c0_9 = arith.constant 0 : index
    %22 = vector.load %arg3[%c0_8, %c0_9] : memref<1x32xf32, #tpu.memory_space<vmem>>, vector<1x32xf32>
    %23 = vector.broadcast %22 : vector<1x32xf32> to vector<16x32xf32>
    %24 = arith.addf %21, %23 : vector<16x32xf32>
    %25 = arith.truncf %24 : vector<16x32xf32> to vector<16x32xbf16>
    %c0_10 = arith.constant 0 : index
    %c0_11 = arith.constant 0 : index
    %26 = vector.load %arg4[%c0_10, %c0_11] : memref<32x32xbf16, #tpu.memory_space<vmem>>, vector<32x32xbf16>
    %cst_12 = arith.constant dense<0.000000e+00> : vector<16x32xf32>
    %27 = tpu.matmul %25, %26, %cst_12 {dimension_numbers = #tpu.dot_dimension_numbers<[1], [0], [0], [1], [0, 0, 1, 1], [], []>} : vector<16x32xbf16>, vector<32x32xbf16>, vector<16x32xf32> -> vector<16x32xf32>
    %c0_13 = arith.constant 0 : index
    %c0_14 = arith.constant 0 : index
    %28 = vector.load %arg5[%c0_13, %c0_14] : memref<1x32xf32, #tpu.memory_space<vmem>>, vector<1x32xf32>
    %29 = vector.broadcast %28 : vector<1x32xf32> to vector<16x32xf32>
    %30 = arith.addf %27, %29 : vector<16x32xf32>
    %c0_15 = arith.constant 0 : index
    %c0_16 = arith.constant 0 : index
    %31 = vector.load %arg6[%c0_15, %c0_16] : memref<16x32xf32, #tpu.memory_space<vmem>>, vector<16x32xf32>
    %cst_17 = arith.constant 1.000000e-01 : f32
    %32 = vector.broadcast %cst_17 : f32 to vector<16x32xf32>
    %33 = arith.cmpf oge, %31, %32 : vector<16x32xf32>
    %cst_18 = arith.constant 1.11111116 : f32
    %34 = vector.broadcast %cst_18 : f32 to vector<16x32xf32>
    %35 = arith.mulf %30, %34 : vector<16x32xf32>
    %cst_19 = arith.constant 0.000000e+00 : f32
    %36 = vector.broadcast %cst_19 : f32 to vector<16x32xf32>
    %37 = arith.select %33, %35, %36 : vector<16x32xi1>, vector<16x32xf32>
    %38 = arith.addf %0, %37 : vector<16x32xf32>
    %c0_20 = arith.constant 0 : index
    %c0_21 = arith.constant 0 : index
    %39 = vector.load %arg7[%c0_20, %c0_21] : memref<16x32xf32, #tpu.memory_space<vmem>>, vector<16x32xf32>
    tpu.vector_store %arg7[%c0_20, %c0_21], %38 {strides = array<i32>} : memref<16x32xf32, #tpu.memory_space<vmem>>, vector<16x32xf32>,
    return
  }
  func.func @transform_0(%arg0: i32) -> (i32, i32) {
    %c0_i32 = arith.constant 0 : i32
    %c0_i32_0 = arith.constant 0 : i32
    return %arg0, %c0_i32 : i32, i32
  }
  func.func @transform_1(%arg0: i32) -> (i32, i32) {
    %c0_i32 = arith.constant 0 : i32
    %c0_i32_0 = arith.constant 0 : i32
    %c0_i32_1 = arith.constant 0 : i32
    return %c0_i32, %c0_i32_0 : i32, i32
  }
  func.func @transform_2(%arg0: i32) -> (i32, i32) {
    %c0_i32 = arith.constant 0 : i32
    %c0_i32_0 = arith.constant 0 : i32
    %c0_i32_1 = arith.constant 0 : i32
    return %c0_i32, %c0_i32_0 : i32, i32
  }
  func.func @transform_3(%arg0: i32) -> (i32, i32) {
    %c0_i32 = arith.constant 0 : i32
    %c0_i32_0 = arith.constant 0 : i32
    %c0_i32_1 = arith.constant 0 : i32
    return %c0_i32, %c0_i32_0 : i32, i32
  }
  func.func @transform_4(%arg0: i32) -> (i32, i32) {
    %c0_i32 = arith.constant 0 : i32
    %c0_i32_0 = arith.constant 0 : i32
    %c0_i32_1 = arith.constant 0 : i32
    return %c0_i32, %c0_i32_0 : i32, i32
  }
  func.func @transform_5(%arg0: i32) -> (i32, i32) {
    %c0_i32 = arith.constant 0 : i32
    %c0_i32_0 = arith.constant 0 : i32
    return %arg0, %c0_i32 : i32, i32
  }
  func.func @transform_6(%arg0: i32) -> (i32, i32) {
    %c0_i32 = arith.constant 0 : i32
    %c0_i32_0 = arith.constant 0 : i32
    return %arg0, %c0_i32 : i32, i32
  }
}

</mosaic_0001>

<llo_original>
// kernel: tpu_custom_call.1
$region0: #{tpu_custom_call.1}
  #allocation0 [shape = 'u32[]', space=smem, size = 0x4, offset = 0x4, fixed_abs, tag = 'smem constant byte address 0x4 - core index']
  #allocation1 [shape = 'u32[72,128]{1,0:T(1,128)}', space=vmem, size = 0x9000, scoped, tag = 'internal scratch']
  %s0 = inlined_call_operand.hbm [shape: f32[16,32], index: 0, kind: input, shape index: {}]
  %s1 = inlined_call_operand.hbm [shape: f32[1,32], index: 1, kind: input, shape index: {}]
  %s2 = inlined_call_operand.vmem [shape: f32[1,32], index: 2, kind: input, shape index: {}]
  %s3 = inlined_call_operand.hbm [shape: bf16[32,32], index: 3, kind: input, shape index: {}]
  %s4 = inlined_call_operand.vmem [shape: f32[1,32], index: 4, kind: input, shape index: {}]
  %s5 = inlined_call_operand.hbm [shape: f32[16,32], index: 5, kind: input, shape index: {}]
  %s6 = inlined_call_operand.hbm [shape: f32[16,32], index: 6, kind: output, shape index: {}]
  %s7 = sld [smem:[#allocation0]]
  $region50: #{tpu_custom_call.1} parent=0
    _
  %s9 = ssub.s32 1, %s7
  %s10 = scalar_select 0, %s9, %s7
  $region1: #{tpu_custom_call.1} parent=0
    #allocation2 [shape = 'u8[8192]{0}', space=vmem, size = 0x2000, scoped, tag = 'input window, operand 0, single buffered']
    #allocation3 [shape = 's32[1]{0}', space=sflag, size = 0x4, scoped, tag = 'scoped memory for tpu_custom_call.1']
    #allocation4 [shape = 's32[1]{0}', space=sflag, size = 0x4, scoped, tag = 'scoped memory for tpu_custom_call.1']
    #allocation5 [shape = 'u8[512]{0}', space=vmem, size = 0x400, scoped, tag = 'input window, operand 1, single buffered']
    #allocation6 [shape = 's32[1]{0}', space=sflag, size = 0x4, scoped, tag = 'scoped memory for tpu_custom_call.1']
    #allocation7 [shape = 'u8[8192]{0}', space=vmem, size = 0x2000, scoped, tag = 'input window, operand 3, single buffered']
    #allocation8 [shape = 'u8[8192]{0}', space=vmem, size = 0x2000, scoped, tag = 'input window, operand 5, single buffered']
    #allocation9 [shape = 's32[1]{0}', space=sflag, size = 0x4, scoped, tag = 'scoped memory for tpu_custom_call.1']
    #allocation10 [shape = 'u8[8192]{0}', space=vmem, size = 0x2000, scoped, tag = 'output window, operand 0, single buffered']
    %11 = vsyncpa [#allocation3], 0
    %12 = vsyncpa [#allocation6], 0
    %13 = vsyncpa [#allocation9], 0
    %14 = vsyncpa [#allocation4], 0
    // Predicated region
    $region2: #{tpu_custom_call.1} parent=1 // pred_check
      _
    $region3: #{tpu_custom_call.1} parent=1 // pred_check_branch
      %16 = sbr.rel (0) target = $region5
    $region4: #{tpu_custom_call.1} parent=1 // pred_region
      %18 = vsyncadd [#allocation3], 0
      %s19 = sshll.u32 %s0, 4
      %s20 = int_to_ptr.hbm [resolvable:$true] %s19
      %s21 = sshll.u32 [#allocation2], 4
      %s22 = int_to_ptr.vmem [resolvable:$true] %s21
      %27 = dma.hbm_to_vmem [thread:$0]  %s20, 256, %s22, [#allocation3], 128, 128, 8
    $region5: #{tpu_custom_call.1} parent=1 // pred_fallthru
      _
    // Predicated region
    $region6: #{tpu_custom_call.1} parent=1 // pred_check
      _
    $region7: #{tpu_custom_call.1} parent=1 // pred_check_branch
      %29 = sbr.rel (0) target = $region9
    $region8: #{tpu_custom_call.1} parent=1 // pred_region
      %31 = vsyncadd [#allocation6], 0
      %s33 = sshll.u32 %s1, 4
      %s34 = int_to_ptr.hbm [resolvable:$true] %s33
      %s35 = sshll.u32 [#allocation5], 4
      %s36 = int_to_ptr.vmem [resolvable:$true] %s35
      %38 = dma.hbm_to_vmem [thread:$0]  %s34, 16, %s36, [#allocation6]
    $region9: #{tpu_custom_call.1} parent=1 // pred_fallthru
      _
    // Predicated region
    $region10: #{tpu_custom_call.1} parent=1 // pred_check
      _
    $region11: #{tpu_custom_call.1} parent=1 // pred_check_branch
      %40 = sbr.rel (0) target = $region13
    $region12: #{tpu_custom_call.1} parent=1 // pred_region
      _
    $region13: #{tpu_custom_call.1} parent=1 // pred_fallthru
      _
    // Predicated region
    $region14: #{tpu_custom_call.1} parent=1 // pred_check
      _
    $region15: #{tpu_custom_call.1} parent=1 // pred_check_branch
      %42 = sbr.rel (0) target = $region17
    $region16: #{tpu_custom_call.1} parent=1 // pred_region
      %44 = vsyncadd [#allocation6], 0
      %s45 = sshll.u32 %s3, 4
      %s46 = int_to_ptr.hbm [resolvable:$true] %s45
      %s47 = sshll.u32 [#allocation7], 4
      %s48 = int_to_ptr.vmem [resolvable:$true] %s47
      %53 = dma.hbm_to_vmem [thread:$0]  %s46, 256, %s48, [#allocation6], 64, 64, 4
    $region17: #{tpu_custom_call.1} parent=1 // pred_fallthru
      _
    // Predicated region
    $region18: #{tpu_custom_call.1} parent=1 // pred_check
      _
    $region19: #{tpu_custom_call.1} parent=1 // pred_check_branch
      %55 = sbr.rel (0) target = $region21
    $region20: #{tpu_custom_call.1} parent=1 // pred_region
      _
    $region21: #{tpu_custom_call.1} parent=1 // pred_fallthru
      _
    // Predicated region
    $region22: #{tpu_custom_call.1} parent=1 // pred_check
      _
    $region23: #{tpu_custom_call.1} parent=1 // pred_check_branch
      %57 = sbr.rel (0) target = $region25
    $region24: #{tpu_custom_call.1} parent=1 // pred_region
      %59 = vsyncadd [#allocation9], 0
      %s60 = sshll.u32 %s5, 4
      %s61 = int_to_ptr.hbm [resolvable:$true] %s60
      %s62 = sshll.u32 [#allocation8], 4
      %s63 = int_to_ptr.vmem [resolvable:$true] %s62
      %68 = dma.hbm_to_vmem [thread:$0]  %s61, 256, %s63, [#allocation9], 128, 128, 8
    $region25: #{tpu_custom_call.1} parent=1 // pred_fallthru
      _
    // Predicated region
    $region26: #{tpu_custom_call.1} parent=1 // pred_check
      _
    $region27: #{tpu_custom_call.1} parent=1 // pred_check_branch
      %70 = sbr.rel (0) target = $region29
    $region28: #{tpu_custom_call.1} parent=1 // pred_region
      %72 = dma.done [#allocation3], 256
    $region29: #{tpu_custom_call.1} parent=1 // pred_fallthru
      _
    // Predicated region
    $region30: #{tpu_custom_call.1} parent=1 // pred_check
      _
    $region31: #{tpu_custom_call.1} parent=1 // pred_check_branch
      %74 = sbr.rel (0) target = $region33
    $region32: #{tpu_custom_call.1} parent=1 // pred_region
      %76 = dma.done [#allocation6], 16
    $region33: #{tpu_custom_call.1} parent=1 // pred_fallthru
      _
    // Predicated region
    $region34: #{tpu_custom_call.1} parent=1 // pred_check
      _
    $region35: #{tpu_custom_call.1} parent=1 // pred_check_branch
      %78 = sbr.rel (0) target = $region37
    $region36: #{tpu_custom_call.1} parent=1 // pred_region
      %80 = dma.done [#allocation6], 256
    $region37: #{tpu_custom_call.1} parent=1 // pred_fallthru
      _
    // Predicated region
    $region38: #{tpu_custom_call.1} parent=1 // pred_check
      _
    $region39: #{tpu_custom_call.1} parent=1 // pred_check_branch
      %82 = sbr.rel (0) target = $region41
    $region40: #{tpu_custom_call.1} parent=1 // pred_region
      %84 = dma.done [#allocation9], 256
    $region41: #{tpu_custom_call.1} parent=1 // pred_fallthru
      _
    %v86 = vld [vmem:[#allocation2] sm:$0xff]
    %v87 = vld [vmem:[#allocation2 + $0x8] sm:$0xff]
    %vm88 = vcmask 261120
    %v89 = vsel %vm88, %v86, 0.0
    %90 = vadd.xlane.f32.xlu0 %v89
    %v91 = vpop.xlane.xlu0 %90
    %v92 = vsel %vm88, %v87, 0.0
    %93 = vadd.xlane.f32.xlu0 %v92
    %v94 = vpop.xlane.xlu0 %93
    %v95 = vrcp.pop 32.0
    %v96 = vmul.f32 32.0, %v95
    %v97 = vsub.f32 1.0, %v96
    %v98 = vmul.f32 %v95, %v97
    %v99 = vadd.f32 %v95, %v98
    %vm100 = vweird.f32 %v95
    %v101 = vsel %vm100, %v95, %v99
    %v102 = vmul.f32 %v91, %v101
    %v103 = vmul.f32 %v94, %v101
    %v104 = vsub.f32 %v86, %v102
    %v105 = vsub.f32 %v87, %v103
    %v106 = vmul.f32 %v104, %v104
    %v107 = vmul.f32 %v105, %v105
    %v108 = vsel %vm88, %v106, 0.0
    %109 = vadd.xlane.f32.xlu0 %v108
    %v110 = vpop.xlane.xlu0 %109
    %v111 = vsel %vm88, %v107, 0.0
    %112 = vadd.xlane.f32.xlu0 %v111
    %v113 = vpop.xlane.xlu0 %112
    %v114 = vmul.f32 %v110, 0.032258064
    %v115 = vmul.f32 %v113, 0.032258064
    %v116 = vrsqrt.pop %v114
    %v117 = vmul.f32 %v116, %v114
    %v118 = vmul.f32 %v117, %v116
    %v119 = vmul.f32 0.5, %v118
    %v120 = vsub.f32 1.5, %v119
    %v121 = vmul.f32 %v116, %v120
    %v122 = vmul.f32 %v114, %v121
    %vm123 = vcmp.eq.f32.partialorder %v114, inf
    %v124 = vsel %vm123, %v114, %v122
    %vm125 = vcmp.eq.f32.partialorder %v114, 0.0
    %v126 = vand.u32 %v114, 2147483648
    %v127 = vsel %vm125, %v126, %v124
    %v128 = vrsqrt.pop %v115
    %v129 = vmul.f32 %v128, %v115
    %v130 = vmul.f32 %v129, %v128
    %v131 = vmul.f32 0.5, %v130
    %v132 = vsub.f32 1.5, %v131
    %v133 = vmul.f32 %v128, %v132
    %v134 = vmul.f32 %v115, %v133
    %vm135 = vcmp.eq.f32.partialorder %v115, inf
    %v136 = vsel %vm135, %v115, %v134
    %vm137 = vcmp.eq.f32.partialorder %v115, 0.0
    %v138 = vand.u32 %v115, 2147483648
    %v139 = vsel %vm137, %v138, %v136
    %v140 = vadd.f32 %v127, 1e-06
    %v141 = vadd.f32 %v139, 1e-06
    %v142 = vrcp.pop %v140
    %v143 = vmul.f32 %v140, %v142
    %v144 = vsub.f32 1.0, %v143
    %v145 = vmul.f32 %v142, %v144
    %v146 = vadd.f32 %v142, %v145
    %vm147 = vweird.f32 %v140
    %vm148 = vweird.f32 %v142
    %vm149 = vmor %vm147, %vm148
    %v150 = vsel %vm149, %v142, %v146
    %v151 = vand.u32 2147483647, %v140
    %vm152 = vcmp.eq.f32.partialorder %v151, 8.507059e+37
    %v153 = vand.u32 %v140, 2147483648
    %v154 = vor.u32 1.1754944e-38, %v153
    %v155 = vsel %vm152, %v154, %v150
    %v156 = vmul.f32 1.0, %v155
    %v157 = vrcp.pop %v141
    %v158 = vmul.f32 %v141, %v157
    %v159 = vsub.f32 1.0, %v158
    %v160 = vmul.f32 %v157, %v159
    %v161 = vadd.f32 %v157, %v160
    %vm162 = vweird.f32 %v141
    %vm163 = vweird.f32 %v157
    %vm164 = vmor %vm162, %vm163
    %v165 = vsel %vm164, %v157, %v161
    %v166 = vand.u32 2147483647, %v141
    %vm167 = vcmp.eq.f32.partialorder %v166, 8.507059e+37
    %v168 = vand.u32 %v141, 2147483648
    %v169 = vor.u32 1.1754944e-38, %v168
    %v170 = vsel %vm167, %v169, %v165
    %v171 = vmul.f32 1.0, %v170
    %v172 = vld [vmem:[#allocation5] sm:$0x1]
    %v173 = vmul.f32 %v104, %v156
    %v174 = vmul.f32 %v105, %v171
    %v176 = vperm.slane %v172, 0
    %v178 = vmul.f32 %v176, %v173
    %v179 = vmul.f32 %v176, %v174
    %v180 = vld [vmem:[%s2] sm:$0x1]
    %v182 = vperm.slane %v180, 0
    %v184 = vadd.f32 %v178, %v182
    %v185 = vadd.f32 %v179, %v182
    %v186 = vpack.c.bf16 %v185, %v184
    %v187 = vld [vmem:[#allocation7] sm:$0xf]
    %v188 = vld [vmem:[#allocation7 + $0x4] sm:$0xf]
    %v189 = vld [vmem:[#allocation7 + $0x8] sm:$0xf]
    %v190 = vld [vmem:[#allocation7 + $0xc] sm:$0xf]
    %v191 = vld [vmem:[%s4] sm:$0x1]
    %v193 = vperm.slane %v191, 0
    %v199 = vunpack.c.l.b16 %v187
    %v200 = vunpack.c.l.b16 %v188
    %v201 = vunpack.c.l.b16 %v189
    %v202 = vunpack.c.l.b16 %v190
    %v203 = vpack.c.b16 %v200, %v199
    %v204 = vpack.c.b16 %v202, %v201
    %v208 = vsel %vm88, %v186, 0
    %210 = vmatpush.bf16.msra.mxu0 0
    %211 = vmatpush.bf16.msra.mxu0 0
    %212 = vmatpush.bf16.msra.mxu0 0
    %213 = vmatpush.bf16.msra.mxu0 0
    %214 = vmatpush.bf16.msra.mxu0 0
    %215 = vmatpush.bf16.msra.mxu0 0
    %216 = vmatpush.bf16.msra.mxu0 %v204
    %217 = vmatpush.bf16.msra.mxu0 %v203
    %218 = vmatmul.bf16.gmra.mxu0 %v208
    %v219 = vpop.f32.mrf.mxu0
    %v220 = vadd.f32 %v193, %v219
    %v221 = vpop.f32.mrf.mxu0
    %v222 = vadd.f32 %v193, %v221
    %223 = vdwg.mxu0
    %v224 = vld [vmem:[#allocation8] sm:$0xff]
    %v225 = vld [vmem:[#allocation8 + $0x8] sm:$0xff]
    %vm226 = vcmp.ge.f32.partialorder %v224, 0.1
    %vm227 = vcmp.ge.f32.partialorder %v225, 0.1
    %v228 = vmul.f32 %v220, 1.1111112
    %v229 = vmul.f32 %v222, 1.1111112
    %v230 = vsel %vm226, %v228, 0.0
    %v231 = vsel %vm227, %v229, 0.0
    %v232 = vadd.f32 %v86, %v230
    %v233 = vadd.f32 %v87, %v231
    %234 = vst.msk [vmem:[#allocation10] sm:$0xff] %vm88, %v232
    %235 = vst.msk [vmem:[#allocation10 + $0x8] sm:$0xff] %vm88, %v233
    // Predicated region
    $region42: #{tpu_custom_call.1} parent=1 // pred_check
      _
    $region43: #{tpu_custom_call.1} parent=1 // pred_check_branch
      %237 = sbr.rel (0) target = $region45
    $region44: #{tpu_custom_call.1} parent=1 // pred_region
      %239 = vsyncadd [#allocation4], 0
      %s240 = sshll.u32 [#allocation10], 4
      %s241 = int_to_ptr.vmem [resolvable:$true] %s240
      %s242 = sshll.u32 %s6, 4
      %s243 = int_to_ptr.hbm [resolvable:$true] %s242
      %248 = dma.vmem_to_hbm [thread:$0]  %s241, 256, %s243, [#allocation4], 128, 128, 8
    $region45: #{tpu_custom_call.1} parent=1 // pred_fallthru
      _
    // Predicated region
    $region46: #{tpu_custom_call.1} parent=1 // pred_check
      _
    $region47: #{tpu_custom_call.1} parent=1 // pred_check_branch
      %250 = sbr.rel (0) target = $region49
    $region48: #{tpu_custom_call.1} parent=1 // pred_region
      %252 = dma.done [#allocation4], 256
    $region49: #{tpu_custom_call.1} parent=1 // pred_fallthru
      _
    %253 = vsyncpa [#allocation3], 1
    %254 = vsyncpa [#allocation6], 1
    %255 = vsyncpa [#allocation9], 1
    %256 = vsyncpa [#allocation4], 1

</llo_original>
